<compile_context>
chip_gen: v6e
topology: v6e:2x2x1
jax: 0.10.0
libtpu: 0.0.40
codegen_flags: <defaults>
</compile_context>

<pallas_src>
import jax
import jax.numpy as jnp
from jax.experimental import pallas as pl
from jax.experimental.pallas import tpu as pltpu


_SUBLANE = {4: 8, 2: 16, 1: 32}  # itemsize -> sublane pack


def _round_up(v, m):
    return ((v + m - 1) // m) * m


def _round_down(v, m):
    return (v // m) * m


def _default_tile_bytes():
    """Per-tile (per-buffer) byte budget, tuned per TPU generation."""
    kind = ""
    try:
        kind = jax.devices()[0].device_kind.lower()
    except Exception:  # pragma: no cover - device query best effort
        pass
    # v7x: 3.2 TB/s HBM makes a 2 MiB step overhead-dominated; 4 MiB tiles keep
    # ~6*4 = 24 MiB live, under the 32 MiB scoped-VMEM default (64 MiB phys).
    if "v7" in kind or "7x" in kind:
        return 4 << 20
    # v5e scoped-VMEM default is 16 MiB -> stay at 2 MiB tiles (~12 MiB live);
    # also fine on v6e.
    return 2 << 20


def _pos_enc_kernel(x_ref, tbl_ref, o_ref):
    # x_ref / o_ref: (Bt, TL, D); tbl_ref: (TL, D) broadcast over the batch tile.
    # Add in the promoted dtype (one rounding step), cast on store; the cast is
    # free here because this kernel is DMA-bound and the VALU slots are idle.
    o_ref[...] = (x_ref[...] + tbl_ref[...][None, :, :]).astype(o_ref.dtype)


def pos_encoding(x, pos_table, *, target_tile_bytes=None):
    """out[b, l, :] = x[b, l, :] + pos_table[l, :]   (requires L <= block_size)."""
    B, L, D = x.shape
    block_size, d_model = pos_table.shape
    if d_model != D:
        raise ValueError(f"d_model mismatch: x has {D}, table has {d_model}")
    if L > block_size:
        raise ValueError(f"sequence length {L} exceeds block_size {block_size}")

    if target_tile_bytes is None:
        target_tile_bytes = _default_tile_bytes()

    x_isz = jnp.dtype(x.dtype).itemsize
    t_isz = jnp.dtype(pos_table.dtype).itemsize
    sublane = max(_SUBLANE.get(x_isz, 8), _SUBLANE.get(t_isz, 8))

    # --- tile sizing: cap each of the x / out / table tiles at the budget -----
    row_bytes_x = D * x_isz          # one (batch, seq) row of x / out
    row_bytes_t = D * t_isz          # one row of the table
    rows_budget_x = max(1, target_tile_bytes // row_bytes_x)   # cap on bt * tl
    tl_cap_tbl = max(1, target_tile_bytes // row_bytes_t)      # cap on tl

    l_pad = _round_up(L, sublane)
    tl = min(l_pad, rows_budget_x, tl_cap_tbl)
    if tl < l_pad:
        tl = max(sublane, _round_down(tl, sublane))
        bt = 1
    else:
        tl = l_pad                                   # multiple of sublane
        bt = min(B, max(1, rows_budget_x // tl))     # fold batch into the block

    num_l = pl.cdiv(L, tl)
    num_b = pl.cdiv(B, bt)

    # --- megacore: give both v7x TensorCores work for non-tiny problems -------
    total_bytes = 2 * B * L * D * x_isz + L * D * t_isz
    small_cutoff = min(1 << 20, target_tile_bytes)
    if num_l * num_b == 1 and total_bytes > small_cutoff:
        if B >= 2:
            bt = pl.cdiv(B, 2)
            num_b = pl.cdiv(B, bt)
        elif L > sublane:
            tl = _round_up(pl.cdiv(L, 2), sublane)
            num_l = pl.cdiv(L, tl)

    cost = pl.CostEstimate(
        flops=B * L * D,
        transcendentals=0,
        bytes_accessed=total_bytes,
    )

    # Grid ordering: L-tiles OUTER, batch-tiles INNER.  The table's block index
    # depends only on the outer axis, so across the inner batch steps the block
    # is unchanged and its HBM->VMEM DMA is elided -> the table is read from
    # HBM exactly once per L-tile, not once per (l, b) grid step.
    return pl.pallas_call(
        _pos_enc_kernel,
        out_shape=jax.ShapeDtypeStruct((B, L, D), x.dtype),
        grid=(num_l, num_b),
        in_specs=[
            pl.BlockSpec((bt, tl, D), lambda l, b: (b, l, 0)),   # x
            pl.BlockSpec((tl, D), lambda l, b: (l, 0)),          # pos table
        ],
        out_specs=pl.BlockSpec((bt, tl, D), lambda l, b: (b, l, 0)),
        input_output_aliases={0: 0},
        cost_estimate=cost,
        compiler_params=pltpu.CompilerParams(
            dimension_semantics=("parallel", "parallel"),
        ),
    )(x, pos_table)


if __name__ == "__main__":
    key = jax.random.PRNGKey(0)
    k1, k2, k3, k4, k5, k6 = jax.random.split(key, 6)

    # ---- Test 1: module-consistent small shapes (single grid step) -----------
    B, L, D, BLOCK_SIZE = 2, 8, 128, 16
    x = jax.random.normal(k1, (B, L, D), dtype=jnp.float32)
    pos_table = jax.random.normal(k2, (BLOCK_SIZE, D), dtype=jnp.float32)

    # Reference is computed & materialized BEFORE the kernel (x is aliased to
    # the kernel output and must not be re-read afterwards by callers who jit).
    ref = jax.block_until_ready(x + pos_table[:L][None, :, :])
    out = jax.block_until_ready(pos_encoding(x, pos_table))
    assert out.shape == (B, L, D)
    assert jnp.allclose(out, ref, atol=1e-6, rtol=1e-6)

    # ---- Test 2: tiled path, multiple L-tiles and batch-tiles -----------------
    B2, L2, D2, BLOCK2 = 4, 256, 128, 512
    x2 = jax.random.normal(k3, (B2, L2, D2), dtype=jnp.float32)
    tbl2 = jax.random.normal(k4, (BLOCK2, D2), dtype=jnp.float32)

    ref2 = jax.block_until_ready(x2 + tbl2[:L2][None, :, :])
    # Small budget forces tl=64, bt=1 -> grid=(4, 4): exercises table reuse
    # across inner batch steps and partial-free multi-tile writeback.
    out2 = jax.block_until_ready(
        pos_encoding(x2, tbl2, target_tile_bytes=32 * 1024)
    )
    assert out2.shape == (B2, L2, D2)
    assert jnp.allclose(out2, ref2, atol=1e-6, rtol=1e-6)

    # ---- Test 3: mixed dtypes (bf16 x, f32 table) + non-aligned L (masking) ---
    B3, L3, D3, BLOCK3 = 2, 50, 256, 64
    x3 = jax.random.normal(k5, (B3, L3, D3), dtype=jnp.bfloat16)
    tbl3 = jax.random.normal(k6, (BLOCK3, D3), dtype=jnp.float32)

    ref3 = jax.block_until_ready(
        (x3.astype(jnp.float32) + tbl3[:L3][None, :, :]).astype(jnp.bfloat16)
    )
    out3 = jax.block_until_ready(pos_encoding(x3, tbl3))
    assert out3.shape == (B3, L3, D3)
    assert out3.dtype == jnp.bfloat16
    assert jnp.allclose(out3.astype(jnp.float32), ref3.astype(jnp.float32),
                        atol=2e-2, rtol=2e-2)

    print("KERNEL_OK")
</pallas_src>

<mosaic_0001>
module attributes {stable_mosaic.version = 11 : i64} {
  func.func @_pos_enc_kernel(%arg0: i32, %arg1: i32, %arg2: memref<2x8x128xf32, #tpu.memory_space<vmem>>, %arg3: memref<8x128xf32, #tpu.memory_space<vmem>>, %arg4: memref<2x8x128xf32, #tpu.memory_space<vmem>>) attributes {dimension_semantics = [#tpu.dimension_semantics<parallel>, #tpu.dimension_semantics<parallel>], iteration_bounds = array<i64: 1, 1>, scalar_prefetch = 0 : i64, scratch_operands = 0 : i64, tpu.core_type = #tpu.core_type<tc>, window_params = [{transform_indices = @transform_0, window_bounds = array<i64: 2, 8, 128>}, {transform_indices = @transform_1, window_bounds = array<i64: 8, 128>}, {transform_indices = @transform_2, window_bounds = array<i64: 2, 8, 128>}]} {
    %c0 = arith.constant 0 : index
    %c0_0 = arith.constant 0 : index
    %c0_1 = arith.constant 0 : index
    %0 = vector.load %arg2[%c0, %c0_0, %c0_1] : memref<2x8x128xf32, #tpu.memory_space<vmem>>, vector<2x8x128xf32>
    %c0_2 = arith.constant 0 : index
    %c0_3 = arith.constant 0 : index
    %1 = vector.load %arg3[%c0_2, %c0_3] : memref<8x128xf32, #tpu.memory_space<vmem>>, vector<8x128xf32>
    %2 = vector.shape_cast %1 : vector<8x128xf32> to vector<1x8x128xf32>
    %3 = vector.broadcast %2 : vector<1x8x128xf32> to vector<2x8x128xf32>
    %4 = arith.addf %0, %3 : vector<2x8x128xf32>
    %c0_4 = arith.constant 0 : index
    %c0_5 = arith.constant 0 : index
    %c0_6 = arith.constant 0 : index
    %5 = vector.load %arg4[%c0_4, %c0_5, %c0_6] : memref<2x8x128xf32, #tpu.memory_space<vmem>>, vector<2x8x128xf32>
    tpu.vector_store %arg4[%c0_4, %c0_5, %c0_6], %4 {strides = array<i32>} : memref<2x8x128xf32, #tpu.memory_space<vmem>>, vector<2x8x128xf32>,
    return
  }
  func.func @transform_0(%arg0: i32, %arg1: i32) -> (i32, i32, i32) {
    %c0_i32 = arith.constant 0 : i32
    %c0_i32_0 = arith.constant 0 : i32
    return %arg1, %arg0, %c0_i32 : i32, i32, i32
  }
  func.func @transform_1(%arg0: i32, %arg1: i32) -> (i32, i32) {
    %c0_i32 = arith.constant 0 : i32
    %c0_i32_0 = arith.constant 0 : i32
    return %arg0, %c0_i32 : i32, i32
  }
  func.func @transform_2(%arg0: i32, %arg1: i32) -> (i32, i32, i32) {
    %c0_i32 = arith.constant 0 : i32
    %c0_i32_0 = arith.constant 0 : i32
    return %arg1, %arg0, %c0_i32 : i32, i32, i32
  }
}

</mosaic_0001>

<llo_original>
// kernel: tpu_custom_call.1
$region0: #{tpu_custom_call.1}
  #allocation0 [shape = 'u32[]', space=smem, size = 0x4, offset = 0x4, fixed_abs, tag = 'smem constant byte address 0x4 - core index']
  #allocation1 [shape = 'u32[144,128]{1,0:T(1,128)}', space=vmem, size = 0x12000, scoped, tag = 'internal scratch']
  %s0 = inlined_call_operand.hbm [shape: f32[2,8,128], index: 0, kind: input, shape index: {}, may-alias: {0,2}]
  %s1 = inlined_call_operand.vmem [shape: f32[16,128], index: 1, kind: input, shape index: {}]
  %s2 = inlined_call_operand.hbm [shape: f32[2,8,128], index: 2, kind: output, shape index: {}, may-alias: {0,2}]
  %s3 = sld [smem:[#allocation0]]
  $region22: #{tpu_custom_call.1} parent=0
    _
  %s5 = ssub.s32 1, %s3
  %s6 = scalar_select 0, %s5, %s3
  $region1: #{tpu_custom_call.1} parent=0
    #allocation2 [shape = 'u8[8192]{0}', space=vmem, size = 0x2000, scoped, tag = 'input window, operand 0, single buffered']
    #allocation3 [shape = 's32[1]{0}', space=sflag, size = 0x4, scoped, tag = 'scoped memory for tpu_custom_call.1']
    #allocation4 [shape = 's32[1]{0}', space=sflag, size = 0x4, scoped, tag = 'scoped memory for tpu_custom_call.1']
    #allocation5 [shape = 'u8[8192]{0}', space=vmem, size = 0x2000, scoped, tag = 'output window, operand 0, single buffered']
    %7 = vsyncpa [#allocation3], 0
    %8 = vsyncpa [#allocation4], 0
    // Predicated region
    $region2: #{tpu_custom_call.1} parent=1 // pred_check
      _
    $region3: #{tpu_custom_call.1} parent=1 // pred_check_branch
      %10 = sbr.rel (0) target = $region5
    $region4: #{tpu_custom_call.1} parent=1 // pred_region
      %s12 = ssub.s32 256, 256
      %13 = vsyncadd [#allocation3], %s12
      %s14 = sshll.u32 [#allocation2], 4
      %s15 = int_to_ptr.vmem [resolvable:$true] %s14
      %20 = dma.hbm_to_vmem [thread:$0]  %s0, 256, %s15, [#allocation3], 128, 128, 8
    $region5: #{tpu_custom_call.1} parent=1 // pred_fallthru
      _
    // Predicated region
    $region6: #{tpu_custom_call.1} parent=1 // pred_check
      _
    $region7: #{tpu_custom_call.1} parent=1 // pred_check_branch
      %22 = sbr.rel (0) target = $region9
    $region8: #{tpu_custom_call.1} parent=1 // pred_region
      _
    $region9: #{tpu_custom_call.1} parent=1 // pred_fallthru
      _
    // Predicated region
    $region10: #{tpu_custom_call.1} parent=1 // pred_check
      _
    $region11: #{tpu_custom_call.1} parent=1 // pred_check_branch
      %24 = sbr.rel (0) target = $region13
    $region12: #{tpu_custom_call.1} parent=1 // pred_region
      %25 = dma.done [#allocation3], 256
    $region13: #{tpu_custom_call.1} parent=1 // pred_fallthru
      _
    %v26 = vld [vmem:[#allocation2] sm:$0xff]
    %v27 = vld [vmem:[#allocation2 + $0x8] sm:$0xff]
    %v28 = vld [vmem:[%s1] sm:$0xff]
    %v29 = vadd.f32 %v26, %v28
    %v30 = vadd.f32 %v27, %v28
    %31 = vst [vmem:[#allocation5] sm:$0xff] %v29
    %32 = vst [vmem:[#allocation5 + $0x8] sm:$0xff] %v30
    // Predicated region
    $region14: #{tpu_custom_call.1} parent=1 // pred_check
      _
    $region15: #{tpu_custom_call.1} parent=1 // pred_check_branch
      %34 = sbr.rel (0) target = $region17
    $region16: #{tpu_custom_call.1} parent=1 // pred_region
      %s36 = ssub.s32 256, 256
      %37 = vsyncadd [#allocation4], %s36
      %s38 = sshll.u32 [#allocation5], 4
      %s39 = int_to_ptr.vmem [resolvable:$true] %s38
      %44 = dma.vmem_to_hbm [thread:$0]  %s39, 256, %s2, [#allocation4], 128, 128, 8
    $region17: #{tpu_custom_call.1} parent=1 // pred_fallthru
      _
    // Predicated region
    $region18: #{tpu_custom_call.1} parent=1 // pred_check
      _
    $region19: #{tpu_custom_call.1} parent=1 // pred_check_branch
      %46 = sbr.rel (0) target = $region21
    $region20: #{tpu_custom_call.1} parent=1 // pred_region
      %47 = dma.done [#allocation4], 256
    $region21: #{tpu_custom_call.1} parent=1 // pred_fallthru
      _
    %48 = vsyncpa [#allocation3], 1
    %49 = vsyncpa [#allocation4], 1

</llo_original>
